<compile_context>
chip_gen: v7x
topology: tpu7x:2x2x1
jax: 0.10.0
libtpu: 0.0.40
codegen_flags: <defaults>
</compile_context>

<pallas_src>
import jax
import jax.numpy as jnp
from jax.experimental import pallas as pl
from jax.experimental.pallas import tpu as pltpu

EPS = 1e-5  # nn.LayerNorm default


def _layernorm_kernel(x_ref, w_ref, b_ref, o_ref):
    # x_ref: (tile_n, C, tile_hw)  -- C on sublanes, H*W lane-dense.
    # w_ref, b_ref: (C, 1)
    x = x_ref[...].astype(jnp.float32)
    w = w_ref[...].astype(jnp.float32)[None, :, :]   # (1, C, 1)
    b = b_ref[...].astype(jnp.float32)[None, :, :]

    mean = jnp.mean(x, axis=1, keepdims=True)                   # reduce over C
    centered = x - mean
    var = jnp.mean(centered * centered, axis=1, keepdims=True)  # biased var (torch LN)
    inv = jax.lax.rsqrt(var + EPS)                              # EUP rsqrt
    y = centered * inv * w + b
    o_ref[...] = y.astype(o_ref.dtype)


def _sublane_multiple(dtype):
    # Sub-32-bit dtypes pack along sublanes; padding granularity grows accordingly.
    itemsize = jnp.dtype(dtype).itemsize
    return {4: 8, 2: 16, 1: 32}.get(itemsize, 8)


def _choose_tiles(n, c, hw, dtype, target_bytes=2 << 20):
    """Pick (tile_n, tile_hw): lane-dense, ~2 MiB VMEM blocks, always dividing dims.

    Accounts for sublane padding of C (e.g. C=4 pads to 8 sublanes for f32) so the
    VMEM footprint estimate is honest even for tiny channel counts.
    """
    itemsize = jnp.dtype(dtype).itemsize
    padded_c = -(-c // _sublane_multiple(dtype)) * _sublane_multiple(dtype)
    bytes_per_lane = padded_c * itemsize

    if hw % 128 != 0:
        # The only legal lane tile that is not a multiple of 128 is the full extent.
        tile_hw = hw
    else:
        max_lanes = max(128, target_bytes // max(bytes_per_lane, 1))
        tile_hw = 128
        d = 128
        while d <= hw:
            if hw % d == 0 and d <= max_lanes:
                tile_hw = d
            d += 128

    tile_n = 1
    if tile_hw == hw:
        # Lane axis fully covered -> stack batch elements to fatten the block.
        per_n = bytes_per_lane * hw
        tile_n = int(max(1, min(n, target_bytes // max(per_n, 1))))
        while n % tile_n != 0:
            tile_n -= 1
    return tile_n, tile_hw


def layer_normalization(x_nchw, weight, bias):
    """Matches the PyTorch module: permute NCHW->NHWC, LayerNorm(C), permute back.

    Implemented without any transposes: normalize over the C axis in native NCHW
    layout (mathematically identical, saves two full HBM read+write passes).
    """
    n, c, h, w = x_nchw.shape
    hw = h * w
    x3 = x_nchw.reshape(n, c, hw)      # contiguous reshape: no data movement
    w2 = weight.reshape(c, 1)
    b2 = bias.reshape(c, 1)

    tile_n, tile_hw = _choose_tiles(n, c, hw, x_nchw.dtype)
    grid = (n // tile_n, hw // tile_hw)

    out3 = pl.pallas_call(
        _layernorm_kernel,
        out_shape=jax.ShapeDtypeStruct((n, c, hw), x_nchw.dtype),
        grid_spec=pltpu.PrefetchScalarGridSpec(
            num_scalar_prefetch=0,
            grid=grid,
            in_specs=[
                pl.BlockSpec((tile_n, c, tile_hw), lambda i, j: (i, 0, j)),
                pl.BlockSpec((c, 1), lambda i, j: (0, 0)),
                pl.BlockSpec((c, 1), lambda i, j: (0, 0)),
            ],
            out_specs=pl.BlockSpec((tile_n, c, tile_hw), lambda i, j: (i, 0, j)),
        ),
        compiler_params=pltpu.CompilerParams(
            # Every block is independent -> both axes shard across v7x's two TCs.
            dimension_semantics=("parallel", "parallel"),
        ),
    )(x3, w2, b2)

    return out3.reshape(n, c, h, w)


if __name__ == "__main__":
    key = jax.random.PRNGKey(0)
    kx, kw, kb = jax.random.split(key, 3)

    N, C, H, W = 2, 4, 16, 16  # features = C = 4
    x = jax.random.normal(kx, (N, C, H, W), dtype=jnp.float32)
    weight = 1.0 + 0.1 * jax.random.normal(kw, (C,), dtype=jnp.float32)
    bias = 0.1 * jax.random.normal(kb, (C,), dtype=jnp.float32)

    out = layer_normalization(x, weight, bias)
    out = jax.block_until_ready(out)

    # Pure-JAX reference following the PyTorch module literally
    # (permute -> LayerNorm over last axis -> permute back).
    x_nhwc = jnp.transpose(x, (0, 2, 3, 1))
    mean = jnp.mean(x_nhwc, axis=-1, keepdims=True)
    var = jnp.mean((x_nhwc - mean) ** 2, axis=-1, keepdims=True)
    ref = (x_nhwc - mean) * jax.lax.rsqrt(var + EPS) * weight + bias
    ref = jnp.transpose(ref, (0, 3, 1, 2))

    assert out.shape == (N, C, H, W)
    assert jnp.allclose(out, ref, atol=1e-5, rtol=1e-5)

    print("KERNEL_OK")
</pallas_src>

<mosaic_0001>
module attributes {stable_mosaic.version = 11 : i64} {
  func.func @_layernorm_kernel(%arg0: i32, %arg1: i32, %arg2: memref<2x4x256xf32, #tpu.memory_space<vmem>>, %arg3: memref<4x1xf32, #tpu.memory_space<vmem>>, %arg4: memref<4x1xf32, #tpu.memory_space<vmem>>, %arg5: memref<2x4x256xf32, #tpu.memory_space<vmem>>) attributes {dimension_semantics = [#tpu.dimension_semantics<parallel>, #tpu.dimension_semantics<parallel>], iteration_bounds = array<i64: 1, 1>, scalar_prefetch = 0 : i64, scratch_operands = 0 : i64, tpu.core_type = #tpu.core_type<tc>, window_params = [{transform_indices = @transform_0, window_bounds = array<i64: 2, 4, 256>}, {pipeline_mode = #tpu.pipeline_mode<synchronous>, transform_indices = @transform_1, window_bounds = array<i64: 4, 1>}, {pipeline_mode = #tpu.pipeline_mode<synchronous>, transform_indices = @transform_2, window_bounds = array<i64: 4, 1>}, {transform_indices = @transform_3, window_bounds = array<i64: 2, 4, 256>}]} {
    %c0 = arith.constant 0 : index
    %c0_0 = arith.constant 0 : index
    %c0_1 = arith.constant 0 : index
    %0 = vector.load %arg2[%c0, %c0_0, %c0_1] : memref<2x4x256xf32, #tpu.memory_space<vmem>>, vector<2x4x256xf32>
    %c0_2 = arith.constant 0 : index
    %c0_3 = arith.constant 0 : index
    %1 = vector.load %arg3[%c0_2, %c0_3] : memref<4x1xf32, #tpu.memory_space<vmem>>, vector<4x1xf32>
    %2 = vector.shape_cast %1 : vector<4x1xf32> to vector<1x4x1xf32>
    %c0_4 = arith.constant 0 : index
    %c0_5 = arith.constant 0 : index
    %3 = vector.load %arg4[%c0_4, %c0_5] : memref<4x1xf32, #tpu.memory_space<vmem>>, vector<4x1xf32>
    %4 = vector.shape_cast %3 : vector<4x1xf32> to vector<1x4x1xf32>
    %cst = arith.constant dense<0.000000e+00> : vector<2x256xf32>
    %5 = vector.multi_reduction <add>, %0, %cst [1] : vector<2x4x256xf32> to vector<2x256xf32>
    %6 = vector.shape_cast %5 : vector<2x256xf32> to vector<2x1x256xf32>
    %cst_6 = arith.constant 4.000000e+00 : f32
    %7 = vector.broadcast %cst_6 : f32 to vector<2x1x256xf32>
    %8 = arith.divf %6, %7 : vector<2x1x256xf32>
    %9 = vector.broadcast %8 : vector<2x1x256xf32> to vector<2x4x256xf32>
    %10 = arith.subf %0, %9 : vector<2x4x256xf32>
    %11 = arith.mulf %10, %10 : vector<2x4x256xf32>
    %cst_7 = arith.constant dense<0.000000e+00> : vector<2x256xf32>
    %12 = vector.multi_reduction <add>, %11, %cst_7 [1] : vector<2x4x256xf32> to vector<2x256xf32>
    %13 = vector.shape_cast %12 : vector<2x256xf32> to vector<2x1x256xf32>
    %cst_8 = arith.constant 4.000000e+00 : f32
    %14 = vector.broadcast %cst_8 : f32 to vector<2x1x256xf32>
    %15 = arith.divf %13, %14 : vector<2x1x256xf32>
    %cst_9 = arith.constant 9.99999974E-6 : f32
    %16 = vector.broadcast %cst_9 : f32 to vector<2x1x256xf32>
    %17 = arith.addf %15, %16 : vector<2x1x256xf32>
    %18 = math.rsqrt %17 : vector<2x1x256xf32>
    %19 = vector.broadcast %18 : vector<2x1x256xf32> to vector<2x4x256xf32>
    %20 = arith.mulf %10, %19 : vector<2x4x256xf32>
    %21 = vector.broadcast %2 : vector<1x4x1xf32> to vector<2x4x256xf32>
    %22 = arith.mulf %20, %21 : vector<2x4x256xf32>
    %23 = vector.broadcast %4 : vector<1x4x1xf32> to vector<2x4x256xf32>
    %24 = arith.addf %22, %23 : vector<2x4x256xf32>
    %c0_10 = arith.constant 0 : index
    %c0_11 = arith.constant 0 : index
    %c0_12 = arith.constant 0 : index
    %25 = vector.load %arg5[%c0_10, %c0_11, %c0_12] : memref<2x4x256xf32, #tpu.memory_space<vmem>>, vector<2x4x256xf32>
    tpu.vector_store %arg5[%c0_10, %c0_11, %c0_12], %24 {strides = array<i32>} : memref<2x4x256xf32, #tpu.memory_space<vmem>>, vector<2x4x256xf32>,
    return
  }
  func.func @transform_0(%arg0: i32, %arg1: i32) -> (i32, i32, i32) {
    %c0_i32 = arith.constant 0 : i32
    %c0_i32_0 = arith.constant 0 : i32
    return %arg0, %c0_i32, %arg1 : i32, i32, i32
  }
  func.func @transform_1(%arg0: i32, %arg1: i32) -> (i32, i32) {
    %c0_i32 = arith.constant 0 : i32
    %c0_i32_0 = arith.constant 0 : i32
    %c0_i32_1 = arith.constant 0 : i32
    return %c0_i32, %c0_i32_0 : i32, i32
  }
  func.func @transform_2(%arg0: i32, %arg1: i32) -> (i32, i32) {
    %c0_i32 = arith.constant 0 : i32
    %c0_i32_0 = arith.constant 0 : i32
    %c0_i32_1 = arith.constant 0 : i32
    return %c0_i32, %c0_i32_0 : i32, i32
  }
  func.func @transform_3(%arg0: i32, %arg1: i32) -> (i32, i32, i32) {
    %c0_i32 = arith.constant 0 : i32
    %c0_i32_0 = arith.constant 0 : i32
    return %arg0, %c0_i32, %arg1 : i32, i32, i32
  }
}

</mosaic_0001>

<llo_original>
// kernel: tpu_custom_call.1
$region0: #{tpu_custom_call.1}
  #allocation0 [shape = 'u32[]', space=smem, size = 0x4, offset = 0x4, fixed_abs, tag = 'smem constant byte address 0x4 - core index']
  #allocation1 [shape = 'u32[144,128]{1,0:T(1,128)}', space=vmem, size = 0x12000, scoped, tag = 'internal scratch']
  %s0 = inlined_call_operand.hbm [shape: f32[2,4,256], index: 0, kind: input, shape index: {}]
  %s1 = inlined_call_operand.vmem [shape: f32[4,1], index: 1, kind: input, shape index: {}]
  %s2 = inlined_call_operand.vmem [shape: f32[4,1], index: 2, kind: input, shape index: {}]
  %s3 = inlined_call_operand.hbm [shape: f32[2,4,256], index: 3, kind: output, shape index: {}]
  %s4 = sld [smem:[#allocation0]]
  $region26: #{tpu_custom_call.1} parent=0
    _
  %s6 = ssub.s32 1, %s4
  %s7 = scalar_select 0, %s6, %s4
  $region1: #{tpu_custom_call.1} parent=0
    #allocation2 [shape = 'u8[8192]{0}', space=vmem, size = 0x2000, scoped, tag = 'input window, operand 0, single buffered']
    #allocation3 [shape = 's32[1]{0}', space=sflag, size = 0x4, scoped, tag = 'scoped memory for tpu_custom_call.1']
    #allocation4 [shape = 's32[1]{0}', space=sflag, size = 0x4, scoped, tag = 'scoped memory for tpu_custom_call.1']
    #allocation5 [shape = 'u8[8192]{0}', space=vmem, size = 0x2000, scoped, tag = 'output window, operand 0, single buffered']
    %8 = vsyncpa [#allocation3], 0
    %9 = vsyncpa [#allocation4], 0
    // Predicated region
    $region2: #{tpu_custom_call.1} parent=1 // pred_check
      _
    $region3: #{tpu_custom_call.1} parent=1 // pred_check_branch
      %11 = sbr.rel (0) target = $region5
    $region4: #{tpu_custom_call.1} parent=1 // pred_region
      %s13 = ssub.s32 256, 256
      %14 = vsyncadd [#allocation3], %s13
      %s15 = sshll.u32 [#allocation2], 4
      %s16 = int_to_ptr.vmem [resolvable:$true] %s15
      %21 = dma.hbm_to_vmem [thread:$0]  %s0, 256, %s16, [#allocation3], 128, 128, 8
    $region5: #{tpu_custom_call.1} parent=1 // pred_fallthru
      _
    // Predicated region
    $region6: #{tpu_custom_call.1} parent=1 // pred_check
      _
    $region7: #{tpu_custom_call.1} parent=1 // pred_check_branch
      %23 = sbr.rel (0) target = $region9
    $region8: #{tpu_custom_call.1} parent=1 // pred_region
      _
    $region9: #{tpu_custom_call.1} parent=1 // pred_fallthru
      _
    // Predicated region
    $region10: #{tpu_custom_call.1} parent=1 // pred_check
      _
    $region11: #{tpu_custom_call.1} parent=1 // pred_check_branch
      %25 = sbr.rel (0) target = $region13
    $region12: #{tpu_custom_call.1} parent=1 // pred_region
      _
    $region13: #{tpu_custom_call.1} parent=1 // pred_fallthru
      _
    // Predicated region
    $region14: #{tpu_custom_call.1} parent=1 // pred_check
      _
    $region15: #{tpu_custom_call.1} parent=1 // pred_check_branch
      %27 = sbr.rel (0) target = $region17
    $region16: #{tpu_custom_call.1} parent=1 // pred_region
      %28 = dma.done [#allocation3], 256
    $region17: #{tpu_custom_call.1} parent=1 // pred_fallthru
      _
    %v29 = vld [vmem:[#allocation2] sm:$0xff]
    %v30 = vld [vmem:[#allocation2 + $0x8] sm:$0xff]
    %v31 = vld [vmem:[%s1] sm:$0xf]
    %v32 = vld [vmem:[%s2] sm:$0xf]
    %v35 = vcombine.high %v29, %v29
    %v36 = vcombine.high %v30, %v30
    %vm39 = vcmask 1043456
    %v40 = vsel %vm39, %v29, 0.0
    %v41 = vrot.slane %v40, 4
    %v42 = vadd.f32 %v40, %v41
    %v43 = vrot.slane %v42, 2
    %v44 = vadd.f32 %v42, %v43
    %v45 = vrot.slane %v44, 1
    %v46 = vadd.f32 %v44, %v45
    %v47 = vsel %vm39, %v35, 0.0
    %v48 = vrot.slane %v47, 4
    %v49 = vadd.f32 %v47, %v48
    %v50 = vrot.slane %v49, 2
    %v51 = vadd.f32 %v49, %v50
    %v52 = vrot.slane %v51, 1
    %v53 = vadd.f32 %v51, %v52
    %v54 = vsel %vm39, %v30, 0.0
    %v55 = vrot.slane %v54, 4
    %v56 = vadd.f32 %v54, %v55
    %v57 = vrot.slane %v56, 2
    %v58 = vadd.f32 %v56, %v57
    %v59 = vrot.slane %v58, 1
    %v60 = vadd.f32 %v58, %v59
    %v61 = vsel %vm39, %v36, 0.0
    %v62 = vrot.slane %v61, 4
    %v63 = vadd.f32 %v61, %v62
    %v64 = vrot.slane %v63, 2
    %v65 = vadd.f32 %v63, %v64
    %v66 = vrot.slane %v65, 1
    %v67 = vadd.f32 %v65, %v66
    %v68 = vrcp.pop 4.0
    %v69 = vmul.f32 %v46, %v68
    %v70 = vmul.f32 %v53, %v68
    %v71 = vmul.f32 %v60, %v68
    %v72 = vmul.f32 %v67, %v68
    %v77 = vcombine.low %v69, %v70
    %v78 = vcombine.low %v71, %v72
    %v81 = vsub.f32 %v29, %v77
    %v82 = vsub.f32 %v30, %v78
    %v83 = vmul.f32 %v81, %v81
    %v84 = vmul.f32 %v82, %v82
    %v87 = vcombine.high %v83, %v83
    %v88 = vcombine.high %v84, %v84
    %v91 = vsel %vm39, %v83, 0.0
    %v92 = vrot.slane %v91, 4
    %v93 = vadd.f32 %v91, %v92
    %v94 = vrot.slane %v93, 2
    %v95 = vadd.f32 %v93, %v94
    %v96 = vrot.slane %v95, 1
    %v97 = vadd.f32 %v95, %v96
    %v98 = vsel %vm39, %v87, 0.0
    %v99 = vrot.slane %v98, 4
    %v100 = vadd.f32 %v98, %v99
    %v101 = vrot.slane %v100, 2
    %v102 = vadd.f32 %v100, %v101
    %v103 = vrot.slane %v102, 1
    %v104 = vadd.f32 %v102, %v103
    %v105 = vsel %vm39, %v84, 0.0
    %v106 = vrot.slane %v105, 4
    %v107 = vadd.f32 %v105, %v106
    %v108 = vrot.slane %v107, 2
    %v109 = vadd.f32 %v107, %v108
    %v110 = vrot.slane %v109, 1
    %v111 = vadd.f32 %v109, %v110
    %v112 = vsel %vm39, %v88, 0.0
    %v113 = vrot.slane %v112, 4
    %v114 = vadd.f32 %v112, %v113
    %v115 = vrot.slane %v114, 2
    %v116 = vadd.f32 %v114, %v115
    %v117 = vrot.slane %v116, 1
    %v118 = vadd.f32 %v116, %v117
    %v119 = vmul.f32 %v97, %v68
    %v120 = vmul.f32 %v104, %v68
    %v121 = vmul.f32 %v111, %v68
    %v122 = vmul.f32 %v118, %v68
    %v123 = vadd.f32 %v119, 1e-05
    %v124 = vadd.f32 %v120, 1e-05
    %v125 = vadd.f32 %v121, 1e-05
    %v126 = vadd.f32 %v122, 1e-05
    %v127 = vrsqrt.pop %v123
    %v128 = vrsqrt.pop %v124
    %v129 = vrsqrt.pop %v125
    %v130 = vrsqrt.pop %v126
    %v135 = vcombine.low %v127, %v128
    %v136 = vcombine.low %v129, %v130
    %v139 = vmul.f32 %v81, %v135
    %v140 = vmul.f32 %v82, %v136
    %142 = vset.pattern.permute.xlu0 0
    %143 = vperm.xlu0 %142, %v31
    %v144 = vpop.permute.xlu0 %143
    %v146 = vunpack.c.l.s4 839922192
    %v147 = vunpack.c.0.s8 %v146
    %v148 = vlaneseq
    %v149 = vshrl.u32 %v148, 7
    %v150 = vsub.s32 %v147, %v149
    %v151 = vrot.slane %v144, %v150
    %v153 = vmul.f32 %v139, %v151
    %v154 = vmul.f32 %v140, %v151
    %156 = vset.pattern.permute.xlu0 0
    %157 = vperm.xlu0 %156, %v32
    %v158 = vpop.permute.xlu0 %157
    %v160 = vunpack.c.l.s4 839922192
    %v161 = vunpack.c.0.s8 %v160
    %v162 = vlaneseq
    %v163 = vshrl.u32 %v162, 7
    %v164 = vsub.s32 %v161, %v163
    %v165 = vrot.slane %v158, %v164
    %v167 = vadd.f32 %v153, %v165
    %v168 = vadd.f32 %v154, %v165
    %169 = vst [vmem:[#allocation5] sm:$0xff] %v167
    %170 = vst [vmem:[#allocation5 + $0x8] sm:$0xff] %v168
    // Predicated region
    $region18: #{tpu_custom_call.1} parent=1 // pred_check
      _
    $region19: #{tpu_custom_call.1} parent=1 // pred_check_branch
      %172 = sbr.rel (0) target = $region21
    $region20: #{tpu_custom_call.1} parent=1 // pred_region
      %s174 = ssub.s32 256, 256
      %175 = vsyncadd [#allocation4], %s174
      %s176 = sshll.u32 [#allocation5], 4
      %s177 = int_to_ptr.vmem [resolvable:$true] %s176
      %182 = dma.vmem_to_hbm [thread:$0]  %s177, 256, %s3, [#allocation4], 128, 128, 8
    $region21: #{tpu_custom_call.1} parent=1 // pred_fallthru
      _
    // Predicated region
    $region22: #{tpu_custom_call.1} parent=1 // pred_check
      _
    $region23: #{tpu_custom_call.1} parent=1 // pred_check_branch
      %184 = sbr.rel (0) target = $region25
    $region24: #{tpu_custom_call.1} parent=1 // pred_region
      %185 = dma.done [#allocation4], 256
    $region25: #{tpu_custom_call.1} parent=1 // pred_fallthru
      _
    %186 = vsyncpa [#allocation3], 1
    %187 = vsyncpa [#allocation4], 1

</llo_original>
